<compile_context>
chip_gen: v6e
topology: v6e:2x2x1
jax: 0.10.0
libtpu: 0.0.40
codegen_flags: <defaults>
</compile_context>

<pallas_src>
import jax
import jax.numpy as jnp
from jax.experimental import pallas as pl
from jax.experimental.pallas import tpu as pltpu


def _mlp_kernel(x_ref, w_ref, b_ref, gamma_ref, beta_ref, o_ref):
    # x_ref: (N, Fin) bf16; w_ref: (Fin, TN) bf16; b/gamma/beta: (1, TN) f32.
    # Linear: bf16 operands feed the MXU, f32 accumulation.
    y = jnp.dot(x_ref[...], w_ref[...], preferred_element_type=jnp.float32)
    y = y + b_ref[...]                                        # (N, TN) f32

    # BatchNorm1d (training mode): per-feature stats over the FULL batch axis
    # (exact because the batch is never tiled), biased variance, eps=1e-5.
    eps = 1e-5
    mean = jnp.mean(y, axis=0, keepdims=True)                 # (1, TN)
    diff = y - mean
    var = jnp.mean(diff * diff, axis=0, keepdims=True)        # (1, TN)

    # Fold the BN affine into a single scale/offset, then fuse ReLU.
    scale = gamma_ref[...] * jax.lax.rsqrt(var + eps)         # (1, TN)
    offset = beta_ref[...] - mean * scale                     # (1, TN)
    o_ref[...] = jnp.maximum(y * scale + offset, 0.0).astype(o_ref.dtype)


def _pick_tn(fout: int) -> int:
    # Prefer 256/512-wide output tiles (fills the 2x256x256 MXU on v6e/v7x);
    # 128 remains optimal for v5e's 128-wide MXUs.
    for tn in (512, 256, 128):
        if fout % tn == 0:
            return tn
    return fout  # small / irregular Fout: one tile spans the whole axis


def mlp_forward(x, w_t, b, gamma, beta):
    """x: (N, Fin); w_t: (Fin, Fout) (pre-transposed nn.Linear weight);
    b, gamma, beta: (1, Fout). Returns (N, Fout) float32."""
    n, fin = x.shape
    fout = w_t.shape[1]
    tn = _pick_tn(fout)

    # bf16 MXU operands; BN parameters stay f32 for the epilogue.
    x_bf = x.astype(jnp.bfloat16)
    w_bf = w_t.astype(jnp.bfloat16)

    return pl.pallas_call(
        _mlp_kernel,
        out_shape=jax.ShapeDtypeStruct((n, fout), jnp.float32),
        grid_spec=pltpu.PrefetchScalarGridSpec(
            num_scalar_prefetch=0,
            grid=(fout // tn,),
            in_specs=[
                pl.BlockSpec((n, fin), lambda j: (0, 0)),   # full batch, full K
                pl.BlockSpec((fin, tn), lambda j: (0, j)),  # weight column tile
                pl.BlockSpec((1, tn), lambda j: (0, j)),    # bias
                pl.BlockSpec((1, tn), lambda j: (0, j)),    # gamma
                pl.BlockSpec((1, tn), lambda j: (0, j)),    # beta
            ],
            out_specs=pl.BlockSpec((n, tn), lambda j: (0, j)),
        ),
        compiler_params=pltpu.CompilerParams(
            dimension_semantics=("parallel",),
        ),
    )(x_bf, w_bf, b, gamma, beta)


if __name__ == "__main__":
    # Small shapes: batch=8, in_features=32, out_features=128
    N, FIN, FOUT = 8, 32, 128

    key = jax.random.PRNGKey(0)
    kx, kw, kb = jax.random.split(key, 3)

    x = jax.random.normal(kx, (N, FIN), dtype=jnp.float32)

    # Deterministic parameter init (PyTorch-like uniform bound 1/sqrt(fan_in))
    bound = 1.0 / (FIN ** 0.5)
    w = jax.random.uniform(kw, (FOUT, FIN), minval=-bound, maxval=bound,
                           dtype=jnp.float32)          # nn.Linear weight (out, in)
    b = jax.random.uniform(kb, (FOUT,), minval=-bound, maxval=bound,
                           dtype=jnp.float32)          # nn.Linear bias
    gamma = jnp.ones((FOUT,), dtype=jnp.float32)       # BatchNorm1d weight
    beta = jnp.zeros((FOUT,), dtype=jnp.float32)       # BatchNorm1d bias

    out = mlp_forward(
        x,
        w.T,                       # (Fin, Fout)
        b.reshape(1, FOUT),
        gamma.reshape(1, FOUT),
        beta.reshape(1, FOUT),
    )
    out = jax.block_until_ready(out)

    # Cross-check against pure-f32 JAX reference (PyTorch training-mode semantics).
    y_ref = x @ w.T + b
    m = y_ref.mean(axis=0, keepdims=True)
    v = ((y_ref - m) ** 2).mean(axis=0, keepdims=True)
    ref = jnp.maximum((y_ref - m) / jnp.sqrt(v + 1e-5) * gamma + beta, 0.0)
    assert out.shape == (N, FOUT)
    # bf16 matmul operands (f32 accumulation, K=32) => loosened tolerance.
    assert jnp.allclose(out, ref, atol=3e-2, rtol=3e-2), "mismatch vs reference"

    print("KERNEL_OK")
</pallas_src>

<mosaic_0001>
module attributes {stable_mosaic.version = 11 : i64} {
  func.func @_mlp_kernel(%arg0: i32, %arg1: memref<8x32xbf16, #tpu.memory_space<vmem>>, %arg2: memref<32x128xbf16, #tpu.memory_space<vmem>>, %arg3: memref<1x128xf32, #tpu.memory_space<vmem>>, %arg4: memref<1x128xf32, #tpu.memory_space<vmem>>, %arg5: memref<1x128xf32, #tpu.memory_space<vmem>>, %arg6: memref<8x128xf32, #tpu.memory_space<vmem>>) attributes {dimension_semantics = [#tpu.dimension_semantics<parallel>], iteration_bounds = array<i64: 1>, scalar_prefetch = 0 : i64, scratch_operands = 0 : i64, tpu.core_type = #tpu.core_type<tc>, window_params = [{pipeline_mode = #tpu.pipeline_mode<synchronous>, transform_indices = @transform_0, window_bounds = array<i64: 8, 32>}, {transform_indices = @transform_1, window_bounds = array<i64: 32, 128>}, {transform_indices = @transform_2, window_bounds = array<i64: 1, 128>}, {transform_indices = @transform_3, window_bounds = array<i64: 1, 128>}, {transform_indices = @transform_4, window_bounds = array<i64: 1, 128>}, {transform_indices = @transform_5, window_bounds = array<i64: 8, 128>}]} {
    %c0 = arith.constant 0 : index
    %c0_0 = arith.constant 0 : index
    %0 = vector.load %arg1[%c0, %c0_0] : memref<8x32xbf16, #tpu.memory_space<vmem>>, vector<8x32xbf16>
    %c0_1 = arith.constant 0 : index
    %c0_2 = arith.constant 0 : index
    %1 = vector.load %arg2[%c0_1, %c0_2] : memref<32x128xbf16, #tpu.memory_space<vmem>>, vector<32x128xbf16>
    %cst = arith.constant dense<0.000000e+00> : vector<8x128xf32>
    %2 = tpu.matmul %0, %1, %cst {dimension_numbers = #tpu.dot_dimension_numbers<[1], [0], [0], [1], [0, 0, 1, 1], [], []>} : vector<8x32xbf16>, vector<32x128xbf16>, vector<8x128xf32> -> vector<8x128xf32>
    %c0_3 = arith.constant 0 : index
    %c0_4 = arith.constant 0 : index
    %3 = vector.load %arg3[%c0_3, %c0_4] : memref<1x128xf32, #tpu.memory_space<vmem>>, vector<1x128xf32>
    %4 = vector.broadcast %3 : vector<1x128xf32> to vector<8x128xf32>
    %5 = arith.addf %2, %4 : vector<8x128xf32>
    %cst_5 = arith.constant dense<0.000000e+00> : vector<128xf32>
    %6 = vector.multi_reduction <add>, %5, %cst_5 [0] : vector<8x128xf32> to vector<128xf32>
    %7 = vector.shape_cast %6 : vector<128xf32> to vector<1x128xf32>
    %cst_6 = arith.constant 8.000000e+00 : f32
    %8 = vector.broadcast %cst_6 : f32 to vector<1x128xf32>
    %9 = arith.divf %7, %8 : vector<1x128xf32>
    %10 = vector.broadcast %9 : vector<1x128xf32> to vector<8x128xf32>
    %11 = arith.subf %5, %10 : vector<8x128xf32>
    %12 = arith.mulf %11, %11 : vector<8x128xf32>
    %cst_7 = arith.constant dense<0.000000e+00> : vector<128xf32>
    %13 = vector.multi_reduction <add>, %12, %cst_7 [0] : vector<8x128xf32> to vector<128xf32>
    %14 = vector.shape_cast %13 : vector<128xf32> to vector<1x128xf32>
    %cst_8 = arith.constant 8.000000e+00 : f32
    %15 = vector.broadcast %cst_8 : f32 to vector<1x128xf32>
    %16 = arith.divf %14, %15 : vector<1x128xf32>
    %c0_9 = arith.constant 0 : index
    %c0_10 = arith.constant 0 : index
    %17 = vector.load %arg4[%c0_9, %c0_10] : memref<1x128xf32, #tpu.memory_space<vmem>>, vector<1x128xf32>
    %cst_11 = arith.constant 9.99999974E-6 : f32
    %18 = vector.broadcast %cst_11 : f32 to vector<1x128xf32>
    %19 = arith.addf %16, %18 : vector<1x128xf32>
    %20 = math.rsqrt %19 : vector<1x128xf32>
    %21 = arith.mulf %17, %20 : vector<1x128xf32>
    %c0_12 = arith.constant 0 : index
    %c0_13 = arith.constant 0 : index
    %22 = vector.load %arg5[%c0_12, %c0_13] : memref<1x128xf32, #tpu.memory_space<vmem>>, vector<1x128xf32>
    %23 = arith.mulf %9, %21 : vector<1x128xf32>
    %24 = arith.subf %22, %23 : vector<1x128xf32>
    %25 = vector.broadcast %21 : vector<1x128xf32> to vector<8x128xf32>
    %26 = arith.mulf %5, %25 : vector<8x128xf32>
    %27 = vector.broadcast %24 : vector<1x128xf32> to vector<8x128xf32>
    %28 = arith.addf %26, %27 : vector<8x128xf32>
    %cst_14 = arith.constant 0.000000e+00 : f32
    %29 = vector.broadcast %cst_14 : f32 to vector<8x128xf32>
    %30 = arith.maximumf %28, %29 : vector<8x128xf32>
    %c0_15 = arith.constant 0 : index
    %c0_16 = arith.constant 0 : index
    %31 = vector.load %arg6[%c0_15, %c0_16] : memref<8x128xf32, #tpu.memory_space<vmem>>, vector<8x128xf32>
    tpu.vector_store %arg6[%c0_15, %c0_16], %30 {strides = array<i32>} : memref<8x128xf32, #tpu.memory_space<vmem>>, vector<8x128xf32>,
    return
  }
  func.func @transform_0(%arg0: i32) -> (i32, i32) {
    %c0_i32 = arith.constant 0 : i32
    %c0_i32_0 = arith.constant 0 : i32
    %c0_i32_1 = arith.constant 0 : i32
    return %c0_i32, %c0_i32_0 : i32, i32
  }
  func.func @transform_1(%arg0: i32) -> (i32, i32) {
    %c0_i32 = arith.constant 0 : i32
    %c0_i32_0 = arith.constant 0 : i32
    return %c0_i32, %arg0 : i32, i32
  }
  func.func @transform_2(%arg0: i32) -> (i32, i32) {
    %c0_i32 = arith.constant 0 : i32
    %c0_i32_0 = arith.constant 0 : i32
    return %c0_i32, %arg0 : i32, i32
  }
  func.func @transform_3(%arg0: i32) -> (i32, i32) {
    %c0_i32 = arith.constant 0 : i32
    %c0_i32_0 = arith.constant 0 : i32
    return %c0_i32, %arg0 : i32, i32
  }
  func.func @transform_4(%arg0: i32) -> (i32, i32) {
    %c0_i32 = arith.constant 0 : i32
    %c0_i32_0 = arith.constant 0 : i32
    return %c0_i32, %arg0 : i32, i32
  }
  func.func @transform_5(%arg0: i32) -> (i32, i32) {
    %c0_i32 = arith.constant 0 : i32
    %c0_i32_0 = arith.constant 0 : i32
    return %c0_i32, %arg0 : i32, i32
  }
}

</mosaic_0001>

<llo_original>
// kernel: tpu_custom_call.1
$region0: #{tpu_custom_call.1}
  #allocation0 [shape = 'u32[]', space=smem, size = 0x4, offset = 0x4, fixed_abs, tag = 'smem constant byte address 0x4 - core index']
  #allocation1 [shape = 'u32[144,128]{1,0:T(1,128)}', space=vmem, size = 0x12000, scoped, tag = 'internal scratch']
  %s0 = inlined_call_operand.hbm [shape: bf16[8,32], index: 0, kind: input, shape index: {}]
  %s1 = inlined_call_operand.hbm [shape: bf16[32,128], index: 1, kind: input, shape index: {}]
  %s2 = inlined_call_operand.vmem [shape: f32[1,128], index: 2, kind: input, shape index: {}]
  %s3 = inlined_call_operand.vmem [shape: f32[1,128], index: 3, kind: input, shape index: {}]
  %s4 = inlined_call_operand.vmem [shape: f32[1,128], index: 4, kind: input, shape index: {}]
  %s5 = inlined_call_operand.hbm [shape: f32[8,128], index: 5, kind: output, shape index: {}]
  %s6 = sld [smem:[#allocation0]]
  $region38: #{tpu_custom_call.1} parent=0
    _
  %s8 = ssub.s32 1, %s6
  %s9 = scalar_select 0, %s8, %s6
  $region1: #{tpu_custom_call.1} parent=0
    #allocation2 [shape = 'u8[2048]{0}', space=vmem, size = 0x800, scoped, tag = 'input window, operand 0, single buffered']
    #allocation3 [shape = 's32[1]{0}', space=sflag, size = 0x4, scoped, tag = 'scoped memory for tpu_custom_call.1']
    #allocation4 [shape = 's32[1]{0}', space=sflag, size = 0x4, scoped, tag = 'scoped memory for tpu_custom_call.1']
    #allocation5 [shape = 'u8[8192]{0}', space=vmem, size = 0x2000, scoped, tag = 'input window, operand 1, single buffered']
    #allocation6 [shape = 's32[1]{0}', space=sflag, size = 0x4, scoped, tag = 'scoped memory for tpu_custom_call.1']
    #allocation7 [shape = 'u8[4096]{0}', space=vmem, size = 0x1000, scoped, tag = 'output window, operand 0, single buffered']
    %10 = vsyncpa [#allocation3], 0
    %11 = vsyncpa [#allocation6], 0
    %12 = vsyncpa [#allocation4], 0
    // Predicated region
    $region2: #{tpu_custom_call.1} parent=1 // pred_check
      _
    $region3: #{tpu_custom_call.1} parent=1 // pred_check_branch
      %14 = sbr.rel (0) target = $region5
    $region4: #{tpu_custom_call.1} parent=1 // pred_region
      %s16 = ssub.s32 64, 64
      %17 = vsyncadd [#allocation3], %s16
      %s19 = sshll.u32 [#allocation2], 4
      %s20 = int_to_ptr.vmem [resolvable:$true] %s19
      %22 = dma.hbm_to_vmem [thread:$0]  %s0, 64, %s20, [#allocation3]
    $region5: #{tpu_custom_call.1} parent=1 // pred_fallthru
      _
    // Predicated region
    $region6: #{tpu_custom_call.1} parent=1 // pred_check
      _
    $region7: #{tpu_custom_call.1} parent=1 // pred_check_branch
      %24 = sbr.rel (0) target = $region9
    $region8: #{tpu_custom_call.1} parent=1 // pred_region
      %s26 = ssub.s32 256, 256
      %27 = vsyncadd [#allocation6], %s26
      %s28 = sshll.u32 [#allocation5], 4
      %s29 = int_to_ptr.vmem [resolvable:$true] %s28
      %34 = dma.hbm_to_vmem [thread:$0]  %s1, 256, %s29, [#allocation6], 64, 64, 4
    $region9: #{tpu_custom_call.1} parent=1 // pred_fallthru
      _
    // Predicated region
    $region10: #{tpu_custom_call.1} parent=1 // pred_check
      _
    $region11: #{tpu_custom_call.1} parent=1 // pred_check_branch
      %36 = sbr.rel (0) target = $region13
    $region12: #{tpu_custom_call.1} parent=1 // pred_region
      _
    $region13: #{tpu_custom_call.1} parent=1 // pred_fallthru
      _
    // Predicated region
    $region14: #{tpu_custom_call.1} parent=1 // pred_check
      _
    $region15: #{tpu_custom_call.1} parent=1 // pred_check_branch
      %38 = sbr.rel (0) target = $region17
    $region16: #{tpu_custom_call.1} parent=1 // pred_region
      _
    $region17: #{tpu_custom_call.1} parent=1 // pred_fallthru
      _
    // Predicated region
    $region18: #{tpu_custom_call.1} parent=1 // pred_check
      _
    $region19: #{tpu_custom_call.1} parent=1 // pred_check_branch
      %40 = sbr.rel (0) target = $region21
    $region20: #{tpu_custom_call.1} parent=1 // pred_region
      _
    $region21: #{tpu_custom_call.1} parent=1 // pred_fallthru
      _
    // Predicated region
    $region22: #{tpu_custom_call.1} parent=1 // pred_check
      _
    $region23: #{tpu_custom_call.1} parent=1 // pred_check_branch
      %42 = sbr.rel (0) target = $region25
    $region24: #{tpu_custom_call.1} parent=1 // pred_region
      %43 = dma.done [#allocation3], 64
    $region25: #{tpu_custom_call.1} parent=1 // pred_fallthru
      _
    // Predicated region
    $region26: #{tpu_custom_call.1} parent=1 // pred_check
      _
    $region27: #{tpu_custom_call.1} parent=1 // pred_check_branch
      %45 = sbr.rel (0) target = $region29
    $region28: #{tpu_custom_call.1} parent=1 // pred_region
      %46 = dma.done [#allocation6], 256
    $region29: #{tpu_custom_call.1} parent=1 // pred_fallthru
      _
    %v48 = vld [vmem:[#allocation2] sm:$0xf]
    %v49 = vld [vmem:[#allocation5] sm:$0xf]
    %v50 = vld [vmem:[#allocation5 + $0x4] sm:$0xf]
    %v51 = vld [vmem:[#allocation5 + $0x8] sm:$0xf]
    %v52 = vld [vmem:[#allocation5 + $0xc] sm:$0xf]
    %v53 = vld [vmem:[%s2] sm:$0x1]
    %v55 = vlaneseq
    %v56 = vshrl.u32 %v55, 7
    %v57 = vsub.s32 0, %v56
    %v58 = vrot.slane %v53, %v57
    %v64 = vunpack.c.l.b16 %v49
    %v65 = vunpack.c.l.b16 %v50
    %v66 = vunpack.c.l.b16 %v51
    %v67 = vunpack.c.l.b16 %v52
    %v68 = vpack.c.b16 %v65, %v64
    %v69 = vpack.c.b16 %v67, %v66
    %vm72 = vcmask 261120
    %v74 = vsel %vm72, %v48, 0
    %76 = vmatprep.subr.bf16.mxu0 0
    %77 = vmatpush1.bf16.msra.mxu0 0
    %78 = vmatprep.subr.bf16.mxu0 0
    %79 = vmatpush1.bf16.msra.mxu0 0
    %80 = vmatprep.subr.bf16.mxu0 0
    %81 = vmatpush1.bf16.msra.mxu0 0
    %82 = vmatprep.subr.bf16.mxu0 0
    %83 = vmatpush1.bf16.msra.mxu0 0
    %84 = vmatprep.subr.bf16.mxu0 0
    %85 = vmatpush1.bf16.msra.mxu0 0
    %86 = vmatprep.subr.bf16.mxu0 0
    %87 = vmatpush1.bf16.msra.mxu0 0
    %88 = vmatprep.subr.bf16.mxu0 0
    %89 = vmatpush1.bf16.msra.mxu0 %v69
    %90 = vmatprep.subr.bf16.mxu0 0
    %91 = vmatpush1.bf16.msra.mxu0 %v68
    %92 = vmatprep.subr.bf16.mxu0 0
    %93 = vmatpush2.bf16.msra.mxu0 0
    %94 = vmatprep.subr.bf16.mxu0 0
    %95 = vmatpush2.bf16.msra.mxu0 0
    %96 = vmatprep.subr.bf16.mxu0 0
    %97 = vmatpush2.bf16.msra.mxu0 0
    %98 = vmatprep.subr.bf16.mxu0 0
    %99 = vmatpush2.bf16.msra.mxu0 0
    %100 = vmatprep.subr.bf16.mxu0 0
    %101 = vmatpush2.bf16.msra.mxu0 0
    %102 = vmatprep.subr.bf16.mxu0 0
    %103 = vmatpush2.bf16.msra.mxu0 0
    %104 = vmatprep.subr.bf16.mxu0 0
    %105 = vmatpush2.bf16.msra.mxu0 0
    %106 = vmatprep.subr.bf16.mxu0 0
    %107 = vmatpush2.bf16.msra.mxu0 0
    %108 = vmatprep.mubr.bf16.mxu0 0
    %109 = vmatmul.mubr.bf16.gmra.mxu0 %v74
    %v110 = vpop.f32.mrf.mxu0
    %v111 = vadd.f32 %v58, %v110
    %v112 = vpop.f32.mrf.mxu0
    %v113 = vpop.f32.mrf.mxu0
    %v114 = vpop.f32.mrf.mxu0
    %115 = vdwg.mxu0
    %v116 = vrot.slane %v111, 4
    %v117 = vadd.f32 %v111, %v116
    %v118 = vrot.slane %v117, 2
    %v119 = vadd.f32 %v117, %v118
    %v120 = vrot.slane %v119, 1
    %v121 = vadd.f32 %v119, %v120
    %v122 = vrcp.pop 8.0
    %v123 = vmul.f32 %v121, %v122
    %v124 = vsub.f32 %v111, %v123
    %v125 = vmul.f32 %v124, %v124
    %v126 = vrot.slane %v125, 4
    %v127 = vadd.f32 %v125, %v126
    %v128 = vrot.slane %v127, 2
    %v129 = vadd.f32 %v127, %v128
    %v130 = vrot.slane %v129, 1
    %v131 = vadd.f32 %v129, %v130
    %v132 = vmul.f32 %v131, %v122
    %v133 = vld [vmem:[%s3] sm:$0x1]
    %v134 = vadd.f32 %v132, 1e-05
    %v135 = vrsqrt.pop %v134
    %v136 = vmul.f32 %v133, %v135
    %v137 = vld [vmem:[%s4] sm:$0x1]
    %v138 = vmul.f32 %v123, %v136
    %v139 = vsub.f32 %v137, %v138
    %v141 = vlaneseq
    %v142 = vshrl.u32 %v141, 7
    %v143 = vsub.s32 0, %v142
    %v144 = vrot.slane %v136, %v143
    %v146 = vmul.f32 %v111, %v144
    %v148 = vlaneseq
    %v149 = vshrl.u32 %v148, 7
    %v150 = vsub.s32 0, %v149
    %v151 = vrot.slane %v139, %v150
    %v153 = vadd.f32 %v146, %v151
    %v154 = vmax.f32 %v153, 0.0
    %155 = vst [vmem:[#allocation7] sm:$0xff] %v154
    // Predicated region
    $region30: #{tpu_custom_call.1} parent=1 // pred_check
      _
    $region31: #{tpu_custom_call.1} parent=1 // pred_check_branch
      %157 = sbr.rel (0) target = $region33
    $region32: #{tpu_custom_call.1} parent=1 // pred_region
      %s159 = ssub.s32 128, 128
      %160 = vsyncadd [#allocation4], %s159
      %s162 = sshll.u32 [#allocation7], 4
      %s163 = int_to_ptr.vmem [resolvable:$true] %s162
      %165 = dma.vmem_to_hbm [thread:$0]  %s163, 128, %s5, [#allocation4]
    $region33: #{tpu_custom_call.1} parent=1 // pred_fallthru
      _
    // Predicated region
    $region34: #{tpu_custom_call.1} parent=1 // pred_check
      _
    $region35: #{tpu_custom_call.1} parent=1 // pred_check_branch
      %167 = sbr.rel (0) target = $region37
    $region36: #{tpu_custom_call.1} parent=1 // pred_region
      %168 = dma.done [#allocation4], 128
    $region37: #{tpu_custom_call.1} parent=1 // pred_fallthru
      _
    %169 = vsyncpa [#allocation3], 1
    %170 = vsyncpa [#allocation6], 1
    %171 = vsyncpa [#allocation4], 1

</llo_original>
